<compile_context>
chip_gen: v5e
topology: v5e:2x2
jax: 0.10.0
libtpu: 0.0.40
codegen_flags: <defaults>
</compile_context>

<pallas_src>
import functools

import jax
import jax.numpy as jnp
from jax import lax
from jax.experimental import pallas as pl
from jax.experimental.pallas import tpu as pltpu

HIDDEN_DEPTH = 4
HIDDEN_WIDTH = 32
IN_FEATURES = 9
PACK = 8  # batch elements packed per row / weight copies on the block diagonal


def _round_up(x, m):
    return ((x + m - 1) // m) * m


def deep_mlp_kernel(x_ref, w1_ref, b1_ref, w2_ref, b2_ref, w3_ref, b3_ref, o_ref,
                    *, chunk_rows, n_chunks, hidden_depth):
    mm_dtype = w2_ref.dtype
    # Weights / biases: loaded once per grid step (constant index_maps -> resident in VMEM).
    w1 = w1_ref[...]                      # (PACK*9,  PACK*32)  matmul dtype
    w2 = w2_ref[...]                      # (PACK*32, PACK*32)
    w3 = w3_ref[...]                      # (PACK*32, PACK)
    b1 = b1_ref[...]                      # (1, PACK*32) f32
    b2 = b2_ref[...]                      # (1, PACK*32) f32
    b3 = b3_ref[0, 0]                     # scalar f32 (SMEM)
    width = w2.shape[1]

    # Hoist b2's broadcast out of the unrolled hidden-layer loop (no CSE of broadcast_in_dim).
    b2b = jnp.broadcast_to(b2, (chunk_rows, width))

    def chunk_body(c, carry):
        start = c * chunk_rows
        if chunk_rows % 8 == 0:
            start = pl.multiple_of(start, 8)

        # (chunk_rows, PACK*9): 8 independent batch elements per row; cast to matmul dtype here
        # (x stays f32 in HBM -> no extra wrapper-side cast pass).
        xb = x_ref[pl.ds(start, chunk_rows), :].astype(mm_dtype)

        # layer1 + ReLU — block-diagonal weights keep the 8 packed elements independent.
        h = jnp.dot(xb, w1, preferred_element_type=jnp.float32) + b1
        h = jnp.maximum(h, 0.0)

        # shared hidden layer reused (HIDDEN_DEPTH - 1) times (same weights, as in PyTorch).
        for _ in range(hidden_depth - 1):
            h = jnp.dot(h.astype(mm_dtype), w2, preferred_element_type=jnp.float32) + b2b
            h = jnp.maximum(h, 0.0)

        # output layer (K=256, N=PACK) + sigmoid; one value per packed element.
        logits = jnp.dot(h.astype(mm_dtype), w3, preferred_element_type=jnp.float32) + b3
        o_ref[pl.ds(start, chunk_rows), :] = jax.nn.sigmoid(logits)
        return carry

    lax.fori_loop(0, n_chunks, chunk_body, 0, unroll=True)


def deep_forward(x, params, *, tile_elems=8192, matmul_dtype=jnp.bfloat16):
    """x: (B, 9) f32. params as produced by init_params. Returns (B, 1) f32."""
    w1, b1, w2, b2, w3, b3 = params       # w: (fan_in, fan_out), b: (1, fan_out)
    B = x.shape[0]
    x = x.astype(jnp.float32)

    # Pack PACK batch elements per row; pure row-major reshape (no HBM rearrangement).
    # Pad (full copy) only when B is not already a multiple of PACK.
    b_pad = _round_up(B, PACK)
    if b_pad != B:
        x = jnp.pad(x, ((0, b_pad - B), (0, 0)))
    rows = b_pad // PACK
    x_rows = x.reshape(rows, PACK * IN_FEATURES)

    # Block-diagonal packed weights: kron(I_PACK, W). Built once, tiny, resident in VMEM.
    eye = jnp.eye(PACK, dtype=jnp.float32)
    w1_big = jnp.kron(eye, w1.astype(jnp.float32)).astype(matmul_dtype)   # (72, 256)
    w2_big = jnp.kron(eye, w2.astype(jnp.float32)).astype(matmul_dtype)   # (256, 256)
    w3_big = jnp.kron(eye, w3.astype(jnp.float32)).astype(matmul_dtype)   # (256, 8)
    b1_big = jnp.tile(b1.astype(jnp.float32).reshape(1, -1), (1, PACK))   # (1, 256)
    b2_big = jnp.tile(b2.astype(jnp.float32).reshape(1, -1), (1, PACK))   # (1, 256)
    b3_s = jnp.asarray(b3, jnp.float32).reshape(1, 1)                     # SMEM scalar

    # Row tiling: large grid steps (amortize ~0.35us/step fixed overhead), small inner
    # chunks (64 rows = 512 batch elements) so the live hidden state stays ~16 vregs.
    if rows <= 64:
        chunk_rows = rows
        tile_rows = rows
    else:
        chunk_rows = 64
        tile_rows = max(chunk_rows, _round_up(tile_elems // PACK, chunk_rows))
        # Keep >= 2 grid steps when possible so v7x's two TensorCores both get work.
        tile_rows = min(tile_rows, _round_up(pl.cdiv(rows, 2), chunk_rows))
    n_chunks = tile_rows // chunk_rows
    grid = (pl.cdiv(rows, tile_rows),)    # partial trailing block handled by Pallas

    width = PACK * HIDDEN_WIDTH
    kernel = functools.partial(deep_mlp_kernel, chunk_rows=chunk_rows,
                               n_chunks=n_chunks, hidden_depth=HIDDEN_DEPTH)

    out_rows = pl.pallas_call(
        kernel,
        out_shape=jax.ShapeDtypeStruct((rows, PACK), jnp.float32),
        grid=grid,
        in_specs=[
            # activations stream over the batch-row grid axis (contiguous HBM reads)
            pl.BlockSpec((tile_rows, PACK * IN_FEATURES), lambda i: (i, 0)),
            # packed weights / biases: constant index_maps -> fetched once, stay resident
            pl.BlockSpec((PACK * IN_FEATURES, width), lambda i: (0, 0)),
            pl.BlockSpec((1, width), lambda i: (0, 0)),
            pl.BlockSpec((width, width), lambda i: (0, 0)),
            pl.BlockSpec((1, width), lambda i: (0, 0)),
            pl.BlockSpec((width, PACK), lambda i: (0, 0)),
            # b3: scalar in SMEM (no padded VMEM tile / per-step DMA channel)
            pl.BlockSpec(memory_space=pltpu.MemorySpace.SMEM),
        ],
        out_specs=pl.BlockSpec((tile_rows, PACK), lambda i: (i, 0)),
        compiler_params=pltpu.CompilerParams(
            dimension_semantics=("parallel",),          # shard batch tiles across TCs on v7x
            vmem_limit_bytes=32 * 1024 * 1024,          # explicit headroom (v5e default is 16 MiB)
        ),
    )(x_rows, w1_big, b1_big, w2_big, b2_big, w3_big, b3_s)

    # (rows, PACK) row-major flatten is exactly batch order.
    return out_rows.reshape(b_pad, 1)[:B]


def init_params(key):
    """Deterministic init matching nn.Linear shapes (uniform +-1/sqrt(fan_in))."""
    k1, k2, k3, k4, k5, k6 = jax.random.split(key, 6)

    def lin(kw, kb, fan_in, fan_out):
        bound = 1.0 / jnp.sqrt(fan_in)
        w = jax.random.uniform(kw, (fan_in, fan_out), jnp.float32, -bound, bound)
        b = jax.random.uniform(kb, (1, fan_out), jnp.float32, -bound, bound)
        return w, b

    w1, b1 = lin(k1, k2, IN_FEATURES, HIDDEN_WIDTH)
    w2, b2 = lin(k3, k4, HIDDEN_WIDTH, HIDDEN_WIDTH)
    w3, b3 = lin(k5, k6, HIDDEN_WIDTH, 1)
    return (w1, b1, w2, b2, w3, b3)


def reference_forward(x, params):
    w1, b1, w2, b2, w3, b3 = params
    h = jnp.maximum(x @ w1 + b1, 0.0)
    for _ in range(HIDDEN_DEPTH - 1):
        h = jnp.maximum(h @ w2 + b2, 0.0)
    return jax.nn.sigmoid(h @ w3 + b3)


if __name__ == "__main__":
    key = jax.random.PRNGKey(0)
    kx1, kx2, kp = jax.random.split(key, 3)
    params = init_params(kp)

    # Small batch: one row, single tile, single inner chunk.
    B1 = 8
    x1 = jax.random.normal(kx1, (B1, IN_FEATURES), jnp.float32)
    ref1 = reference_forward(x1, params)
    out1_f32 = jax.block_until_ready(deep_forward(x1, params, matmul_dtype=jnp.float32))
    assert out1_f32.shape == (B1, 1)
    assert jnp.allclose(out1_f32, ref1, atol=2e-3, rtol=2e-3), "f32 mismatch (B=8)"
    out1_bf16 = jax.block_until_ready(deep_forward(x1, params))     # default bf16 matmuls
    assert jnp.allclose(out1_bf16, ref1, atol=5e-2, rtol=5e-2), "bf16 mismatch (B=8)"

    # Batch not a multiple of PACK: exercises the pad path and a ragged row count.
    B2 = 300
    x2 = jax.random.normal(kx2, (B2, IN_FEATURES), jnp.float32)
    ref2 = reference_forward(x2, params)
    out2 = jax.block_until_ready(deep_forward(x2, params, matmul_dtype=jnp.float32))
    assert out2.shape == (B2, 1)
    assert jnp.allclose(out2, ref2, atol=2e-3, rtol=2e-3), "f32 mismatch (B=300)"

    # Larger batch: multiple grid steps, multiple inner chunks, partial trailing tile.
    B3 = 4288
    x3 = jax.random.normal(kx1, (B3, IN_FEATURES), jnp.float32)
    ref3 = reference_forward(x3, params)
    out3_f32 = jax.block_until_ready(
        deep_forward(x3, params, tile_elems=2048, matmul_dtype=jnp.float32))
    assert out3_f32.shape == (B3, 1)
    assert jnp.allclose(out3_f32, ref3, atol=2e-3, rtol=2e-3), "f32 mismatch (B=4288)"
    out3_bf16 = jax.block_until_ready(deep_forward(x3, params, tile_elems=2048))
    assert jnp.allclose(out3_bf16, ref3, atol=5e-2, rtol=5e-2), "bf16 mismatch (B=4288)"

    print("KERNEL_OK")
</pallas_src>

<mosaic_0001>
module attributes {stable_mosaic.version = 11 : i64} {
  func.func @deep_mlp_kernel(%arg0: i32, %arg1: memref<1x72xf32, #tpu.memory_space<vmem>>, %arg2: memref<72x256xf32, #tpu.memory_space<vmem>>, %arg3: memref<1x256xf32, #tpu.memory_space<vmem>>, %arg4: memref<256x256xf32, #tpu.memory_space<vmem>>, %arg5: memref<1x256xf32, #tpu.memory_space<vmem>>, %arg6: memref<256x8xf32, #tpu.memory_space<vmem>>, %arg7: memref<1x1xf32, #tpu.memory_space<smem>>, %arg8: memref<1x8xf32, #tpu.memory_space<vmem>>) attributes {dimension_semantics = [#tpu.dimension_semantics<parallel>], iteration_bounds = array<i64: 1>, scalar_prefetch = 0 : i64, scratch_operands = 0 : i64, tpu.core_type = #tpu.core_type<tc>, window_params = [{transform_indices = @transform_0, window_bounds = array<i64: 1, 72>}, {pipeline_mode = #tpu.pipeline_mode<synchronous>, transform_indices = @transform_1, window_bounds = array<i64: 72, 256>}, {pipeline_mode = #tpu.pipeline_mode<synchronous>, transform_indices = @transform_2, window_bounds = array<i64: 1, 256>}, {pipeline_mode = #tpu.pipeline_mode<synchronous>, transform_indices = @transform_3, window_bounds = array<i64: 256, 256>}, {pipeline_mode = #tpu.pipeline_mode<synchronous>, transform_indices = @transform_4, window_bounds = array<i64: 1, 256>}, {pipeline_mode = #tpu.pipeline_mode<synchronous>, transform_indices = @transform_5, window_bounds = array<i64: 256, 8>}, {transform_indices = @transform_6, window_bounds = array<i64: 1, 1>}, {transform_indices = @transform_7, window_bounds = array<i64: 1, 8>}]} {
    %c0 = arith.constant 0 : index
    %c0_0 = arith.constant 0 : index
    %0 = vector.load %arg2[%c0, %c0_0] : memref<72x256xf32, #tpu.memory_space<vmem>>, vector<72x256xf32>
    %c0_1 = arith.constant 0 : index
    %c0_2 = arith.constant 0 : index
    %1 = vector.load %arg4[%c0_1, %c0_2] : memref<256x256xf32, #tpu.memory_space<vmem>>, vector<256x256xf32>
    %c0_3 = arith.constant 0 : index
    %c0_4 = arith.constant 0 : index
    %2 = vector.load %arg6[%c0_3, %c0_4] : memref<256x8xf32, #tpu.memory_space<vmem>>, vector<256x8xf32>
    %c0_5 = arith.constant 0 : index
    %c0_6 = arith.constant 0 : index
    %3 = vector.load %arg3[%c0_5, %c0_6] : memref<1x256xf32, #tpu.memory_space<vmem>>, vector<1x256xf32>
    %c0_7 = arith.constant 0 : index
    %c0_8 = arith.constant 0 : index
    %4 = vector.load %arg5[%c0_7, %c0_8] : memref<1x256xf32, #tpu.memory_space<vmem>>, vector<1x256xf32>
    %c0_9 = arith.constant 0 : index
    %c0_10 = arith.constant 0 : index
    %5 = memref.load %arg7[%c0_9, %c0_10] : memref<1x1xf32, #tpu.memory_space<smem>>
    %c0_i32 = arith.constant 0 : i32
    %c1_i32 = arith.constant 1 : i32
    %6 = arith.muli %c0_i32, %c1_i32 : i32
    %7 = arith.index_cast %6 : i32 to index
    %c0_11 = arith.constant 0 : index
    %8 = vector.load %arg1[%7, %c0_11] : memref<1x72xf32, #tpu.memory_space<vmem>>, vector<1x72xf32>
    %cst = arith.constant dense<0.000000e+00> : vector<1x256xf32>
    %9 = tpu.matmul %8, %0, %cst {dimension_numbers = #tpu.dot_dimension_numbers<[1], [0], [0], [1], [0, 0, 1, 1], [], []>} : vector<1x72xf32>, vector<72x256xf32>, vector<1x256xf32> -> vector<1x256xf32>
    %10 = arith.addf %9, %3 : vector<1x256xf32>
    %cst_12 = arith.constant 0.000000e+00 : f32
    %11 = vector.broadcast %cst_12 : f32 to vector<1x256xf32>
    %12 = arith.maximumf %10, %11 : vector<1x256xf32>
    %cst_13 = arith.constant dense<0.000000e+00> : vector<1x256xf32>
    %13 = tpu.matmul %12, %1, %cst_13 {dimension_numbers = #tpu.dot_dimension_numbers<[1], [0], [0], [1], [0, 0, 1, 1], [], []>} : vector<1x256xf32>, vector<256x256xf32>, vector<1x256xf32> -> vector<1x256xf32>
    %14 = arith.addf %13, %4 : vector<1x256xf32>
    %cst_14 = arith.constant 0.000000e+00 : f32
    %15 = vector.broadcast %cst_14 : f32 to vector<1x256xf32>
    %16 = arith.maximumf %14, %15 : vector<1x256xf32>
    %cst_15 = arith.constant dense<0.000000e+00> : vector<1x256xf32>
    %17 = tpu.matmul %16, %1, %cst_15 {dimension_numbers = #tpu.dot_dimension_numbers<[1], [0], [0], [1], [0, 0, 1, 1], [], []>} : vector<1x256xf32>, vector<256x256xf32>, vector<1x256xf32> -> vector<1x256xf32>
    %18 = arith.addf %17, %4 : vector<1x256xf32>
    %cst_16 = arith.constant 0.000000e+00 : f32
    %19 = vector.broadcast %cst_16 : f32 to vector<1x256xf32>
    %20 = arith.maximumf %18, %19 : vector<1x256xf32>
    %cst_17 = arith.constant dense<0.000000e+00> : vector<1x256xf32>
    %21 = tpu.matmul %20, %1, %cst_17 {dimension_numbers = #tpu.dot_dimension_numbers<[1], [0], [0], [1], [0, 0, 1, 1], [], []>} : vector<1x256xf32>, vector<256x256xf32>, vector<1x256xf32> -> vector<1x256xf32>
    %22 = arith.addf %21, %4 : vector<1x256xf32>
    %cst_18 = arith.constant 0.000000e+00 : f32
    %23 = vector.broadcast %cst_18 : f32 to vector<1x256xf32>
    %24 = arith.maximumf %22, %23 : vector<1x256xf32>
    %cst_19 = arith.constant dense<0.000000e+00> : vector<1x8xf32>
    %25 = tpu.matmul %24, %2, %cst_19 {dimension_numbers = #tpu.dot_dimension_numbers<[1], [0], [0], [1], [0, 0, 1, 1], [], []>} : vector<1x256xf32>, vector<256x8xf32>, vector<1x8xf32> -> vector<1x8xf32>
    %26 = vector.broadcast %5 : f32 to vector<1x8xf32>
    %27 = arith.addf %25, %26 : vector<1x8xf32>
    %28 = arith.negf %27 : vector<1x8xf32>
    %29 = math.exp %28 : vector<1x8xf32>
    %cst_20 = arith.constant 1.000000e+00 : f32
    %30 = vector.broadcast %cst_20 : f32 to vector<1x8xf32>
    %31 = arith.addf %30, %29 : vector<1x8xf32>
    %32 = arith.divf %30, %31 : vector<1x8xf32>
    %33 = arith.index_cast %6 : i32 to index
    %c0_21 = arith.constant 0 : index
    %34 = vector.load %arg8[%33, %c0_21] : memref<1x8xf32, #tpu.memory_space<vmem>>, vector<1x8xf32>
    tpu.vector_store %arg8[%33, %c0_21], %32 {strides = array<i32>} : memref<1x8xf32, #tpu.memory_space<vmem>>, vector<1x8xf32>,
    %c1_i32_22 = arith.constant 1 : i32
    return
  }
  func.func @transform_0(%arg0: i32) -> (i32, i32) {
    %c0_i32 = arith.constant 0 : i32
    %c0_i32_0 = arith.constant 0 : i32
    return %arg0, %c0_i32 : i32, i32
  }
  func.func @transform_1(%arg0: i32) -> (i32, i32) {
    %c0_i32 = arith.constant 0 : i32
    %c0_i32_0 = arith.constant 0 : i32
    %c0_i32_1 = arith.constant 0 : i32
    return %c0_i32, %c0_i32_0 : i32, i32
  }
  func.func @transform_2(%arg0: i32) -> (i32, i32) {
    %c0_i32 = arith.constant 0 : i32
    %c0_i32_0 = arith.constant 0 : i32
    %c0_i32_1 = arith.constant 0 : i32
    return %c0_i32, %c0_i32_0 : i32, i32
  }
  func.func @transform_3(%arg0: i32) -> (i32, i32) {
    %c0_i32 = arith.constant 0 : i32
    %c0_i32_0 = arith.constant 0 : i32
    %c0_i32_1 = arith.constant 0 : i32
    return %c0_i32, %c0_i32_0 : i32, i32
  }
  func.func @transform_4(%arg0: i32) -> (i32, i32) {
    %c0_i32 = arith.constant 0 : i32
    %c0_i32_0 = arith.constant 0 : i32
    %c0_i32_1 = arith.constant 0 : i32
    return %c0_i32, %c0_i32_0 : i32, i32
  }
  func.func @transform_5(%arg0: i32) -> (i32, i32) {
    %c0_i32 = arith.constant 0 : i32
    %c0_i32_0 = arith.constant 0 : i32
    %c0_i32_1 = arith.constant 0 : i32
    return %c0_i32, %c0_i32_0 : i32, i32
  }
  func.func @transform_6(%arg0: i32) -> (i32, i32) {
    %c0_i32 = arith.constant 0 : i32
    %c0_i32_0 = arith.constant 0 : i32
    %c0_i32_1 = arith.constant 0 : i32
    return %c0_i32, %c0_i32_0 : i32, i32
  }
  func.func @transform_7(%arg0: i32) -> (i32, i32) {
    %c0_i32 = arith.constant 0 : i32
    %c0_i32_0 = arith.constant 0 : i32
    return %arg0, %c0_i32 : i32, i32
  }
}

</mosaic_0001>

<llo_original>
// kernel: tpu_custom_call.1
$region0: #{tpu_custom_call.1}
  #allocation0 [shape = 'u32[]', space=smem, size = 0x4, offset = 0x4, fixed_abs, tag = 'smem constant byte address 0x4 - core index']
  #allocation1 [shape = 'u32[72,128]{1,0:T(1,128)}', space=vmem, size = 0x9000, scoped, tag = 'internal scratch']
  #allocation2 [shape = 'f32[1,1]{1,0:T(1,128)S(6)}', space=smem, size = 0x200, scoped, tag = 'scoped memory for tpu_custom_call.1']
  %s0 = inlined_call_operand.vmem [shape: f32[1,72], index: 0, kind: input, shape index: {}]
  %s1 = inlined_call_operand.vmem [shape: f32[72,256], index: 1, kind: input, shape index: {}]
  %s2 = inlined_call_operand.vmem [shape: f32[1,256], index: 2, kind: input, shape index: {}]
  %s3 = inlined_call_operand.hbm [shape: f32[256,256], index: 3, kind: input, shape index: {}]
  %s4 = inlined_call_operand.vmem [shape: f32[1,256], index: 4, kind: input, shape index: {}]
  %s5 = inlined_call_operand.vmem [shape: f32[256,8], index: 5, kind: input, shape index: {}]
  %s6 = inlined_call_operand.<no memory space> [shape: f32[1,1], index: 6, kind: input, shape index: {}]
  %s7 = inlined_call_operand.hbm [shape: f32[1,8], index: 7, kind: output, shape index: {}]
  %s8 = sld [smem:[#allocation0]]
  $region42: #{tpu_custom_call.1} parent=0
    _
  %s10 = ssub.s32 1, %s8
  %s11 = scalar_select 0, %s10, %s8
  %12 = sst [smem:[#allocation2]] %s6
  $region1: #{tpu_custom_call.1} parent=0
    #allocation3 [shape = 'u8[262144]{0}', space=vmem, size = 0x40000, scoped, tag = 'input window, operand 3, single buffered']
    #allocation4 [shape = 's32[1]{0}', space=sflag, size = 0x4, scoped, tag = 'scoped memory for tpu_custom_call.1']
    #allocation5 [shape = 's32[1]{0}', space=sflag, size = 0x4, scoped, tag = 'scoped memory for tpu_custom_call.1']
    #allocation6 [shape = 'u8[512]{0}', space=vmem, size = 0x400, scoped, tag = 'output window, operand 0, single buffered']
    %13 = vsyncpa [#allocation4], 0
    %14 = vsyncpa [#allocation5], 0
    // Predicated region
    $region2: #{tpu_custom_call.1} parent=1 // pred_check
      _
    $region3: #{tpu_custom_call.1} parent=1 // pred_check_branch
      %16 = sbr.rel (0) target = $region5
    $region4: #{tpu_custom_call.1} parent=1 // pred_region
      _
    $region5: #{tpu_custom_call.1} parent=1 // pred_fallthru
      _
    // Predicated region
    $region6: #{tpu_custom_call.1} parent=1 // pred_check
      _
    $region7: #{tpu_custom_call.1} parent=1 // pred_check_branch
      %18 = sbr.rel (0) target = $region9
    $region8: #{tpu_custom_call.1} parent=1 // pred_region
      _
    $region9: #{tpu_custom_call.1} parent=1 // pred_fallthru
      _
    // Predicated region
    $region10: #{tpu_custom_call.1} parent=1 // pred_check
      _
    $region11: #{tpu_custom_call.1} parent=1 // pred_check_branch
      %20 = sbr.rel (0) target = $region13
    $region12: #{tpu_custom_call.1} parent=1 // pred_region
      _
    $region13: #{tpu_custom_call.1} parent=1 // pred_fallthru
      _
    // Predicated region
    $region14: #{tpu_custom_call.1} parent=1 // pred_check
      _
    $region15: #{tpu_custom_call.1} parent=1 // pred_check_branch
      %22 = sbr.rel (0) target = $region17
    $region16: #{tpu_custom_call.1} parent=1 // pred_region
      %24 = vsyncadd [#allocation4], 0
      %s25 = sshll.u32 %s3, 4
      %s26 = int_to_ptr.hbm [resolvable:$true] %s25
      %s27 = sshll.u32 [#allocation3], 4
      %s28 = int_to_ptr.vmem [resolvable:$true] %s27
      %33 = dma.hbm_to_vmem [thread:$0]  %s26, 8192, %s28, [#allocation4], 256, 256, 16
    $region17: #{tpu_custom_call.1} parent=1 // pred_fallthru
      _
    // Predicated region
    $region18: #{tpu_custom_call.1} parent=1 // pred_check
      _
    $region19: #{tpu_custom_call.1} parent=1 // pred_check_branch
      %35 = sbr.rel (0) target = $region21
    $region20: #{tpu_custom_call.1} parent=1 // pred_region
      _
    $region21: #{tpu_custom_call.1} parent=1 // pred_fallthru
      _
    // Predicated region
    $region22: #{tpu_custom_call.1} parent=1 // pred_check
      _
    $region23: #{tpu_custom_call.1} parent=1 // pred_check_branch
      %37 = sbr.rel (0) target = $region25
    $region24: #{tpu_custom_call.1} parent=1 // pred_region
      _
    $region25: #{tpu_custom_call.1} parent=1 // pred_fallthru
      _
    // Predicated region
    $region26: #{tpu_custom_call.1} parent=1 // pred_check
      _
    $region27: #{tpu_custom_call.1} parent=1 // pred_check_branch
      %39 = sbr.rel (0) target = $region29
    $region28: #{tpu_custom_call.1} parent=1 // pred_region
      _
    $region29: #{tpu_custom_call.1} parent=1 // pred_fallthru
      _
    // Predicated region
    $region30: #{tpu_custom_call.1} parent=1 // pred_check
      _
    $region31: #{tpu_custom_call.1} parent=1 // pred_check_branch
      %41 = sbr.rel (0) target = $region33
    $region32: #{tpu_custom_call.1} parent=1 // pred_region
      %43 = dma.done [#allocation4], 8192
    $region33: #{tpu_custom_call.1} parent=1 // pred_fallthru
      _
    %v44 = vld [vmem:[%s1] sm:$0xff]
    %v45 = vld [vmem:[%s1 + $0x8] sm:$0xff]
    %v46 = vld [vmem:[%s1 + $0x10] sm:$0xff]
    %v47 = vld [vmem:[%s1 + $0x18] sm:$0xff]
    %v48 = vld [vmem:[%s1 + $0x20] sm:$0xff]
    %v49 = vld [vmem:[%s1 + $0x28] sm:$0xff]
    %v50 = vld [vmem:[%s1 + $0x30] sm:$0xff]
    %v51 = vld [vmem:[%s1 + $0x38] sm:$0xff]
    %v52 = vld [vmem:[%s1 + $0x40] sm:$0xff]
    %v53 = vld [vmem:[%s1 + $0x48] sm:$0xff]
    %v54 = vld [vmem:[%s1 + $0x50] sm:$0xff]
    %v55 = vld [vmem:[%s1 + $0x58] sm:$0xff]
    %v56 = vld [vmem:[%s1 + $0x60] sm:$0xff]
    %v57 = vld [vmem:[%s1 + $0x68] sm:$0xff]
    %v58 = vld [vmem:[%s1 + $0x70] sm:$0xff]
    %v59 = vld [vmem:[%s1 + $0x78] sm:$0xff]
    %v60 = vld [vmem:[%s1 + $0x80] sm:$0xff]
    %v61 = vld [vmem:[%s1 + $0x88] sm:$0xff]
    %v62 = vld [vmem:[#allocation3] sm:$0xff]
    %v63 = vld [vmem:[#allocation3 + $0x8] sm:$0xff]
    %v64 = vld [vmem:[#allocation3 + $0x10] sm:$0xff]
    %v65 = vld [vmem:[#allocation3 + $0x18] sm:$0xff]
    %v66 = vld [vmem:[#allocation3 + $0x20] sm:$0xff]
    %v67 = vld [vmem:[#allocation3 + $0x28] sm:$0xff]
    %v68 = vld [vmem:[#allocation3 + $0x30] sm:$0xff]
    %v69 = vld [vmem:[#allocation3 + $0x38] sm:$0xff]
    %v70 = vld [vmem:[#allocation3 + $0x40] sm:$0xff]
    %v71 = vld [vmem:[#allocation3 + $0x48] sm:$0xff]
    %v72 = vld [vmem:[#allocation3 + $0x50] sm:$0xff]
    %v73 = vld [vmem:[#allocation3 + $0x58] sm:$0xff]
    %v74 = vld [vmem:[#allocation3 + $0x60] sm:$0xff]
    %v75 = vld [vmem:[#allocation3 + $0x68] sm:$0xff]
    %v76 = vld [vmem:[#allocation3 + $0x70] sm:$0xff]
    %v77 = vld [vmem:[#allocation3 + $0x78] sm:$0xff]
    %v78 = vld [vmem:[#allocation3 + $0x80] sm:$0xff]
    %v79 = vld [vmem:[#allocation3 + $0x88] sm:$0xff]
    %v80 = vld [vmem:[#allocation3 + $0x90] sm:$0xff]
    %v81 = vld [vmem:[#allocation3 + $0x98] sm:$0xff]
    %v82 = vld [vmem:[#allocation3 + $0xa0] sm:$0xff]
    %v83 = vld [vmem:[#allocation3 + $0xa8] sm:$0xff]
    %v84 = vld [vmem:[#allocation3 + $0xb0] sm:$0xff]
    %v85 = vld [vmem:[#allocation3 + $0xb8] sm:$0xff]
    %v86 = vld [vmem:[#allocation3 + $0xc0] sm:$0xff]
    %v87 = vld [vmem:[#allocation3 + $0xc8] sm:$0xff]
    %v88 = vld [vmem:[#allocation3 + $0xd0] sm:$0xff]
    %v89 = vld [vmem:[#allocation3 + $0xd8] sm:$0xff]
    %v90 = vld [vmem:[#allocation3 + $0xe0] sm:$0xff]
    %v91 = vld [vmem:[#allocation3 + $0xe8] sm:$0xff]
    %v92 = vld [vmem:[#allocation3 + $0xf0] sm:$0xff]
    %v93 = vld [vmem:[#allocation3 + $0xf8] sm:$0xff]
    %v94 = vld [vmem:[#allocation3 + $0x100] sm:$0xff]
    %v95 = vld [vmem:[#allocation3 + $0x108] sm:$0xff]
    %v96 = vld [vmem:[#allocation3 + $0x110] sm:$0xff]
    %v97 = vld [vmem:[#allocation3 + $0x118] sm:$0xff]
    %v98 = vld [vmem:[#allocation3 + $0x120] sm:$0xff]
    %v99 = vld [vmem:[#allocation3 + $0x128] sm:$0xff]
    %v100 = vld [vmem:[#allocation3 + $0x130] sm:$0xff]
    %v101 = vld [vmem:[#allocation3 + $0x138] sm:$0xff]
    %v102 = vld [vmem:[#allocation3 + $0x140] sm:$0xff]
    %v103 = vld [vmem:[#allocation3 + $0x148] sm:$0xff]
    %v104 = vld [vmem:[#allocation3 + $0x150] sm:$0xff]
    %v105 = vld [vmem:[#allocation3 + $0x158] sm:$0xff]
    %v106 = vld [vmem:[#allocation3 + $0x160] sm:$0xff]
    %v107 = vld [vmem:[#allocation3 + $0x168] sm:$0xff]
    %v108 = vld [vmem:[#allocation3 + $0x170] sm:$0xff]
    %v109 = vld [vmem:[#allocation3 + $0x178] sm:$0xff]
    %v110 = vld [vmem:[#allocation3 + $0x180] sm:$0xff]
    %v111 = vld [vmem:[#allocation3 + $0x188] sm:$0xff]
    %v112 = vld [vmem:[#allocation3 + $0x190] sm:$0xff]
    %v113 = vld [vmem:[#allocation3 + $0x198] sm:$0xff]
    %v114 = vld [vmem:[#allocation3 + $0x1a0] sm:$0xff]
    %v115 = vld [vmem:[#allocation3 + $0x1a8] sm:$0xff]
    %v116 = vld [vmem:[#allocation3 + $0x1b0] sm:$0xff]
    %v117 = vld [vmem:[#allocation3 + $0x1b8] sm:$0xff]
    %v118 = vld [vmem:[#allocation3 + $0x1c0] sm:$0xff]
    %v119 = vld [vmem:[#allocation3 + $0x1c8] sm:$0xff]
    %v120 = vld [vmem:[#allocation3 + $0x1d0] sm:$0xff]
    %v121 = vld [vmem:[#allocation3 + $0x1d8] sm:$0xff]
    %v122 = vld [vmem:[#allocation3 + $0x1e0] sm:$0xff]
    %v123 = vld [vmem:[#allocation3 + $0x1e8] sm:$0xff]
    %v124 = vld [vmem:[#allocation3 + $0x1f0] sm:$0xff]
    %v125 = vld [vmem:[#allocation3 + $0x1f8] sm:$0xff]
    %v126 = vld [vmem:[%s5] sm:$0xff]
    %v127 = vld [vmem:[%s5 + $0x8] sm:$0xff]
    %v128 = vld [vmem:[%s5 + $0x10] sm:$0xff]
    %v129 = vld [vmem:[%s5 + $0x18] sm:$0xff]
    %v130 = vld [vmem:[%s5 + $0x20] sm:$0xff]
    %v131 = vld [vmem:[%s5 + $0x28] sm:$0xff]
    %v132 = vld [vmem:[%s5 + $0x30] sm:$0xff]
    %v133 = vld [vmem:[%s5 + $0x38] sm:$0xff]
    %v134 = vld [vmem:[%s5 + $0x40] sm:$0xff]
    %v135 = vld [vmem:[%s5 + $0x48] sm:$0xff]
    %v136 = vld [vmem:[%s5 + $0x50] sm:$0xff]
    %v137 = vld [vmem:[%s5 + $0x58] sm:$0xff]
    %v138 = vld [vmem:[%s5 + $0x60] sm:$0xff]
    %v139 = vld [vmem:[%s5 + $0x68] sm:$0xff]
    %v140 = vld [vmem:[%s5 + $0x70] sm:$0xff]
    %v141 = vld [vmem:[%s5 + $0x78] sm:$0xff]
    %v142 = vld [vmem:[%s5 + $0x80] sm:$0xff]
    %v143 = vld [vmem:[%s5 + $0x88] sm:$0xff]
    %v144 = vld [vmem:[%s5 + $0x90] sm:$0xff]
    %v145 = vld [vmem:[%s5 + $0x98] sm:$0xff]
    %v146 = vld [vmem:[%s5 + $0xa0] sm:$0xff]
    %v147 = vld [vmem:[%s5 + $0xa8] sm:$0xff]
    %v148 = vld [vmem:[%s5 + $0xb0] sm:$0xff]
    %v149 = vld [vmem:[%s5 + $0xb8] sm:$0xff]
    %v150 = vld [vmem:[%s5 + $0xc0] sm:$0xff]
    %v151 = vld [vmem:[%s5 + $0xc8] sm:$0xff]
    %v152 = vld [vmem:[%s5 + $0xd0] sm:$0xff]
    %v153 = vld [vmem:[%s5 + $0xd8] sm:$0xff]
    %v154 = vld [vmem:[%s5 + $0xe0] sm:$0xff]
    %v155 = vld [vmem:[%s5 + $0xe8] sm:$0xff]
    %v156 = vld [vmem:[%s5 + $0xf0] sm:$0xff]
    %v157 = vld [vmem:[%s5 + $0xf8] sm:$0xff]
    %v158 = vld [vmem:[%s2] sm:$0x3]
    %v159 = vld [vmem:[%s4] sm:$0x3]
    %s160 = sld [smem:[#allocation2]]
    %v161 = vld [vmem:[%s0] sm:$0x1]
    %v163 = vperm.slane %v158, 0
    %v164 = vperm.slane %v158, 1
    %vm167 = vcmask 588800
    %v169 = vsel %vm167, %v161, 0
    %171 = vmatpush.msra.mxu0 0.0
    %172 = vmatpush.msra.mxu0 0.0
    %173 = vmatpush.msra.mxu0 0.0
    %174 = vmatpush.msra.mxu0 0.0
    %175 = vmatpush.msra.mxu0 0.0
    %176 = vmatpush.msra.mxu0 0.0
    %177 = vmatpush.msra.mxu0 0.0
    %178 = vmatpush.msra.mxu0 %v60
    %179 = vmatpush.msra.mxu0 %v58
    %180 = vmatpush.msra.mxu0 %v56
    %181 = vmatpush.msra.mxu0 %v54
    %182 = vmatpush.msra.mxu0 %v52
    %183 = vmatpush.msra.mxu0 %v50
    %184 = vmatpush.msra.mxu0 %v48
    %185 = vmatpush.msra.mxu0 %v46
    %186 = vmatpush.msra.mxu0 %v44
    %187 = vmatmul.f32.gmra.mxu0 %v169
    %v188 = vpop.f32.mrf.mxu0
    %v189 = vadd.f32 %v163, %v188
    %190 = vdwg.mxu0
    %191 = vmatpush.msra.mxu0 0.0
    %192 = vmatpush.msra.mxu0 0.0
    %193 = vmatpush.msra.mxu0 0.0
    %194 = vmatpush.msra.mxu0 0.0
    %195 = vmatpush.msra.mxu0 0.0
    %196 = vmatpush.msra.mxu0 0.0
    %197 = vmatpush.msra.mxu0 0.0
    %198 = vmatpush.msra.mxu0 %v61
    %199 = vmatpush.msra.mxu0 %v59
    %200 = vmatpush.msra.mxu0 %v57
    %201 = vmatpush.msra.mxu0 %v55
    %202 = vmatpush.msra.mxu0 %v53
    %203 = vmatpush.msra.mxu0 %v51
    %204 = vmatpush.msra.mxu0 %v49
    %205 = vmatpush.msra.mxu0 %v47
    %206 = vmatpush.msra.mxu0 %v45
    %207 = vmatmul.f32.gmra.mxu0 %v169
    %v208 = vpop.f32.mrf.mxu0
    %v209 = vadd.f32 %v164, %v208
    %210 = vdwg.mxu0
    %v211 = vmax.f32 %v189, 0.0
    %v212 = vmax.f32 %v209, 0.0
    %v214 = vperm.slane %v159, 0
    %v215 = vperm.slane %v159, 1
    %218 = vmatpush.msra.mxu0 %v92
    %219 = vmatpush.msra.mxu0 %v90
    %220 = vmatpush.msra.mxu0 %v88
    %221 = vmatpush.msra.mxu0 %v86
    %222 = vmatpush.msra.mxu0 %v84
    %223 = vmatpush.msra.mxu0 %v82
    %224 = vmatpush.msra.mxu0 %v80
    %225 = vmatpush.msra.mxu0 %v78
    %226 = vmatpush.msra.mxu0 %v76
    %227 = vmatpush.msra.mxu0 %v74
    %228 = vmatpush.msra.mxu0 %v72
    %229 = vmatpush.msra.mxu0 %v70
    %230 = vmatpush.msra.mxu0 %v68
    %231 = vmatpush.msra.mxu0 %v66
    %232 = vmatpush.msra.mxu0 %v64
    %233 = vmatpush.msra.mxu0 %v62
    %234 = vmatmul.f32.gmra.mxu0 %v211
    %v235 = vpop.f32.mrf.mxu0
    %v236 = vadd.f32 %v214, %v235
    %237 = vdwg.mxu0
    %238 = vmatpush.msra.mxu0 %v124
    %239 = vmatpush.msra.mxu0 %v122
    %240 = vmatpush.msra.mxu0 %v120
    %241 = vmatpush.msra.mxu0 %v118
    %242 = vmatpush.msra.mxu0 %v116
    %243 = vmatpush.msra.mxu0 %v114
    %244 = vmatpush.msra.mxu0 %v112
    %245 = vmatpush.msra.mxu0 %v110
    %246 = vmatpush.msra.mxu0 %v108
    %247 = vmatpush.msra.mxu0 %v106
    %248 = vmatpush.msra.mxu0 %v104
    %249 = vmatpush.msra.mxu0 %v102
    %250 = vmatpush.msra.mxu0 %v100
    %251 = vmatpush.msra.mxu0 %v98
    %252 = vmatpush.msra.mxu0 %v96
    %253 = vmatpush.msra.mxu0 %v94
    %254 = vmatmul.f32.gmra.mxu0 %v212
    %v255 = vpop.f32.mrf.mxu0
    %v256 = vadd.f32 %v236, %v255
    %257 = vdwg.mxu0
    %258 = vmatpush.msra.mxu0 %v93
    %259 = vmatpush.msra.mxu0 %v91
    %260 = vmatpush.msra.mxu0 %v89
    %261 = vmatpush.msra.mxu0 %v87
    %262 = vmatpush.msra.mxu0 %v85
    %263 = vmatpush.msra.mxu0 %v83
    %264 = vmatpush.msra.mxu0 %v81
    %265 = vmatpush.msra.mxu0 %v79
    %266 = vmatpush.msra.mxu0 %v77
    %267 = vmatpush.msra.mxu0 %v75
    %268 = vmatpush.msra.mxu0 %v73
    %269 = vmatpush.msra.mxu0 %v71
    %270 = vmatpush.msra.mxu0 %v69
    %271 = vmatpush.msra.mxu0 %v67
    %272 = vmatpush.msra.mxu0 %v65
    %273 = vmatpush.msra.mxu0 %v63
    %274 = vmatmul.f32.gmra.mxu0 %v211
    %v275 = vpop.f32.mrf.mxu0
    %v276 = vadd.f32 %v215, %v275
    %277 = vdwg.mxu0
    %278 = vmatpush.msra.mxu0 %v125
    %279 = vmatpush.msra.mxu0 %v123
    %280 = vmatpush.msra.mxu0 %v121
    %281 = vmatpush.msra.mxu0 %v119
    %282 = vmatpush.msra.mxu0 %v117
    %283 = vmatpush.msra.mxu0 %v115
    %284 = vmatpush.msra.mxu0 %v113
    %285 = vmatpush.msra.mxu0 %v111
    %286 = vmatpush.msra.mxu0 %v109
    %287 = vmatpush.msra.mxu0 %v107
    %288 = vmatpush.msra.mxu0 %v105
    %289 = vmatpush.msra.mxu0 %v103
    %290 = vmatpush.msra.mxu0 %v101
    %291 = vmatpush.msra.mxu0 %v99
    %292 = vmatpush.msra.mxu0 %v97
    %293 = vmatpush.msra.mxu0 %v95
    %294 = vmatmul.f32.gmra.mxu0 %v212
    %v295 = vpop.f32.mrf.mxu0
    %v296 = vadd.f32 %v276, %v295
    %297 = vdwg.mxu0
    %v298 = vmax.f32 %v256, 0.0
    %v299 = vmax.f32 %v296, 0.0
    %300 = vmatpush.msra.mxu0 %v92
    %301 = vmatpush.msra.mxu0 %v90
    %302 = vmatpush.msra.mxu0 %v88
    %303 = vmatpush.msra.mxu0 %v86
    %304 = vmatpush.msra.mxu0 %v84
    %305 = vmatpush.msra.mxu0 %v82
    %306 = vmatpush.msra.mxu0 %v80
    %307 = vmatpush.msra.mxu0 %v78
    %308 = vmatpush.msra.mxu0 %v76
    %309 = vmatpush.msra.mxu0 %v74
    %310 = vmatpush.msra.mxu0 %v72
    %311 = vmatpush.msra.mxu0 %v70
    %312 = vmatpush.msra.mxu0 %v68
    %313 = vmatpush.msra.mxu0 %v66
    %314 = vmatpush.msra.mxu0 %v64
    %315 = vmatpush.msra.mxu0 %v62
    %316 = vmatmul.f32.gmra.mxu0 %v298
    %v317 = vpop.f32.mrf.mxu0
    %v318 = vadd.f32 %v214, %v317
    %319 = vdwg.mxu0
    %320 = vmatpush.msra.mxu0 %v124
    %321 = vmatpush.msra.mxu0 %v122
    %322 = vmatpush.msra.mxu0 %v120
    %323 = vmatpush.msra.mxu0 %v118
    %324 = vmatpush.msra.mxu0 %v116
    %325 = vmatpush.msra.mxu0 %v114
    %326 = vmatpush.msra.mxu0 %v112
    %327 = vmatpush.msra.mxu0 %v110
    %328 = vmatpush.msra.mxu0 %v108
    %329 = vmatpush.msra.mxu0 %v106
    %330 = vmatpush.msra.mxu0 %v104
    %331 = vmatpush.msra.mxu0 %v102
    %332 = vmatpush.msra.mxu0 %v100
    %333 = vmatpush.msra.mxu0 %v98
    %334 = vmatpush.msra.mxu0 %v96
    %335 = vmatpush.msra.mxu0 %v94
    %336 = vmatmul.f32.gmra.mxu0 %v299
    %v337 = vpop.f32.mrf.mxu0
    %v338 = vadd.f32 %v318, %v337
    %339 = vdwg.mxu0
    %340 = vmatpush.msra.mxu0 %v93
    %341 = vmatpush.msra.mxu0 %v91
    %342 = vmatpush.msra.mxu0 %v89
    %343 = vmatpush.msra.mxu0 %v87
    %344 = vmatpush.msra.mxu0 %v85
    %345 = vmatpush.msra.mxu0 %v83
    %346 = vmatpush.msra.mxu0 %v81
    %347 = vmatpush.msra.mxu0 %v79
    %348 = vmatpush.msra.mxu0 %v77
    %349 = vmatpush.msra.mxu0 %v75
    %350 = vmatpush.msra.mxu0 %v73
    %351 = vmatpush.msra.mxu0 %v71
    %352 = vmatpush.msra.mxu0 %v69
    %353 = vmatpush.msra.mxu0 %v67
    %354 = vmatpush.msra.mxu0 %v65
    %355 = vmatpush.msra.mxu0 %v63
    %356 = vmatmul.f32.gmra.mxu0 %v298
    %v357 = vpop.f32.mrf.mxu0
    %v358 = vadd.f32 %v215, %v357
    %359 = vdwg.mxu0
    %360 = vmatpush.msra.mxu0 %v125
    %361 = vmatpush.msra.mxu0 %v123
    %362 = vmatpush.msra.mxu0 %v121
    %363 = vmatpush.msra.mxu0 %v119
    %364 = vmatpush.msra.mxu0 %v117
    %365 = vmatpush.msra.mxu0 %v115
    %366 = vmatpush.msra.mxu0 %v113
    %367 = vmatpush.msra.mxu0 %v111
    %368 = vmatpush.msra.mxu0 %v109
    %369 = vmatpush.msra.mxu0 %v107
    %370 = vmatpush.msra.mxu0 %v105
    %371 = vmatpush.msra.mxu0 %v103
    %372 = vmatpush.msra.mxu0 %v101
    %373 = vmatpush.msra.mxu0 %v99
    %374 = vmatpush.msra.mxu0 %v97
    %375 = vmatpush.msra.mxu0 %v95
    %376 = vmatmul.f32.gmra.mxu0 %v299
    %v377 = vpop.f32.mrf.mxu0
    %v378 = vadd.f32 %v358, %v377
    %379 = vdwg.mxu0
    %v380 = vmax.f32 %v338, 0.0
    %v381 = vmax.f32 %v378, 0.0
    %382 = vmatpush.msra.mxu0 %v92
    %383 = vmatpush.msra.mxu0 %v90
    %384 = vmatpush.msra.mxu0 %v88
    %385 = vmatpush.msra.mxu0 %v86
    %386 = vmatpush.msra.mxu0 %v84
    %387 = vmatpush.msra.mxu0 %v82
    %388 = vmatpush.msra.mxu0 %v80
    %389 = vmatpush.msra.mxu0 %v78
    %390 = vmatpush.msra.mxu0 %v76
    %391 = vmatpush.msra.mxu0 %v74
    %392 = vmatpush.msra.mxu0 %v72
    %393 = vmatpush.msra.mxu0 %v70
    %394 = vmatpush.msra.mxu0 %v68
    %395 = vmatpush.msra.mxu0 %v66
    %396 = vmatpush.msra.mxu0 %v64
    %397 = vmatpush.msra.mxu0 %v62
    %398 = vmatmul.f32.gmra.mxu0 %v380
    %v399 = vpop.f32.mrf.mxu0
    %v400 = vadd.f32 %v214, %v399
    %401 = vdwg.mxu0
    %402 = vmatpush.msra.mxu0 %v124
    %403 = vmatpush.msra.mxu0 %v122
    %404 = vmatpush.msra.mxu0 %v120
    %405 = vmatpush.msra.mxu0 %v118
    %406 = vmatpush.msra.mxu0 %v116
    %407 = vmatpush.msra.mxu0 %v114
    %408 = vmatpush.msra.mxu0 %v112
    %409 = vmatpush.msra.mxu0 %v110
    %410 = vmatpush.msra.mxu0 %v108
    %411 = vmatpush.msra.mxu0 %v106
    %412 = vmatpush.msra.mxu0 %v104
    %413 = vmatpush.msra.mxu0 %v102
    %414 = vmatpush.msra.mxu0 %v100
    %415 = vmatpush.msra.mxu0 %v98
    %416 = vmatpush.msra.mxu0 %v96
    %417 = vmatpush.msra.mxu0 %v94
    %418 = vmatmul.f32.gmra.mxu0 %v381
    %v419 = vpop.f32.mrf.mxu0
    %v420 = vadd.f32 %v400, %v419
    %421 = vdwg.mxu0
    %422 = vmatpush.msra.mxu0 %v93
    %423 = vmatpush.msra.mxu0 %v91
    %424 = vmatpush.msra.mxu0 %v89
    %425 = vmatpush.msra.mxu0 %v87
    %426 = vmatpush.msra.mxu0 %v85
    %427 = vmatpush.msra.mxu0 %v83
    %428 = vmatpush.msra.mxu0 %v81
    %429 = vmatpush.msra.mxu0 %v79
    %430 = vmatpush.msra.mxu0 %v77
    %431 = vmatpush.msra.mxu0 %v75
    %432 = vmatpush.msra.mxu0 %v73
    %433 = vmatpush.msra.mxu0 %v71
    %434 = vmatpush.msra.mxu0 %v69
    %435 = vmatpush.msra.mxu0 %v67
    %436 = vmatpush.msra.mxu0 %v65
    %437 = vmatpush.msra.mxu0 %v63
    %438 = vmatmul.f32.gmra.mxu0 %v380
    %v439 = vpop.f32.mrf.mxu0
    %v440 = vadd.f32 %v215, %v439
    %441 = vdwg.mxu0
    %442 = vmatpush.msra.mxu0 %v125
    %443 = vmatpush.msra.mxu0 %v123
    %444 = vmatpush.msra.mxu0 %v121
    %445 = vmatpush.msra.mxu0 %v119
    %446 = vmatpush.msra.mxu0 %v117
    %447 = vmatpush.msra.mxu0 %v115
    %448 = vmatpush.msra.mxu0 %v113
    %449 = vmatpush.msra.mxu0 %v111
    %450 = vmatpush.msra.mxu0 %v109
    %451 = vmatpush.msra.mxu0 %v107
    %452 = vmatpush.msra.mxu0 %v105
    %453 = vmatpush.msra.mxu0 %v103
    %454 = vmatpush.msra.mxu0 %v101
    %455 = vmatpush.msra.mxu0 %v99
    %456 = vmatpush.msra.mxu0 %v97
    %457 = vmatpush.msra.mxu0 %v95
    %458 = vmatmul.f32.gmra.mxu0 %v381
    %v459 = vpop.f32.mrf.mxu0
    %v460 = vadd.f32 %v440, %v459
    %461 = vdwg.mxu0
    %v462 = vmax.f32 %v420, 0.0
    %v463 = vmax.f32 %v460, 0.0
    %v464 = vstv %s160
    %465 = vmatpush.msra.mxu0 %v141
    %466 = vmatpush.msra.mxu0 %v140
    %467 = vmatpush.msra.mxu0 %v139
    %468 = vmatpush.msra.mxu0 %v138
    %469 = vmatpush.msra.mxu0 %v137
    %470 = vmatpush.msra.mxu0 %v136
    %471 = vmatpush.msra.mxu0 %v135
    %472 = vmatpush.msra.mxu0 %v134
    %473 = vmatpush.msra.mxu0 %v133
    %474 = vmatpush.msra.mxu0 %v132
    %475 = vmatpush.msra.mxu0 %v131
    %476 = vmatpush.msra.mxu0 %v130
    %477 = vmatpush.msra.mxu0 %v129
    %478 = vmatpush.msra.mxu0 %v128
    %479 = vmatpush.msra.mxu0 %v127
    %480 = vmatpush.msra.mxu0 %v126
    %481 = vmatmul.f32.gmra.mxu0 %v462
    %v482 = vpop.f32.mrf.mxu0
    %v483 = vadd.f32 %v464, %v482
    %484 = vdwg.mxu0
    %485 = vmatpush.msra.mxu0 %v157
    %486 = vmatpush.msra.mxu0 %v156
    %487 = vmatpush.msra.mxu0 %v155
    %488 = vmatpush.msra.mxu0 %v154
    %489 = vmatpush.msra.mxu0 %v153
    %490 = vmatpush.msra.mxu0 %v152
    %491 = vmatpush.msra.mxu0 %v151
    %492 = vmatpush.msra.mxu0 %v150
    %493 = vmatpush.msra.mxu0 %v149
    %494 = vmatpush.msra.mxu0 %v148
    %495 = vmatpush.msra.mxu0 %v147
    %496 = vmatpush.msra.mxu0 %v146
    %497 = vmatpush.msra.mxu0 %v145
    %498 = vmatpush.msra.mxu0 %v144
    %499 = vmatpush.msra.mxu0 %v143
    %500 = vmatpush.msra.mxu0 %v142
    %501 = vmatmul.f32.gmra.mxu0 %v463
    %v502 = vpop.f32.mrf.mxu0
    %v503 = vadd.f32 %v483, %v502
    %504 = vdwg.mxu0
    %v505 = vxor.u32 %v503, 2147483648
    %v506 = vmul.f32 %v505, 1.442695
    %v507 = vpow.pop %v506
    %v508 = vadd.f32 %v507, 1.0
    %v509 = vrcp.pop %v508
    %v510 = vmul.f32 %v508, %v509
    %v511 = vsub.f32 1.0, %v510
    %v512 = vmul.f32 %v509, %v511
    %v513 = vadd.f32 %v509, %v512
    %vm514 = vweird.f32 %v508
    %vm515 = vweird.f32 %v509
    %vm516 = vmor %vm514, %vm515
    %v517 = vsel %vm516, %v509, %v513
    %v518 = vand.u32 2147483647, %v508
    %vm519 = vcmp.eq.f32.partialorder %v518, 8.507059e+37
    %v520 = vand.u32 %v508, 2147483648
    %v521 = vor.u32 1.1754944e-38, %v520
    %v522 = vsel %vm519, %v521, %v517
    %v523 = vmul.f32 1.0, %v522
    %vm524 = vcmask 57344
    %525 = vst.msk [vmem:[#allocation6] sm:$0x1] %vm524, %v523
    // Predicated region
    $region34: #{tpu_custom_call.1} parent=1 // pred_check
      _
    $region35: #{tpu_custom_call.1} parent=1 // pred_check_branch
      %527 = sbr.rel (0) target = $region37
    $region36: #{tpu_custom_call.1} parent=1 // pred_region
      %529 = vsyncadd [#allocation5], 0
      %s531 = sshll.u32 [#allocation6], 4
      %s532 = int_to_ptr.vmem [resolvable:$true] %s531
      %s533 = sshll.u32 %s7, 4
      %s534 = int_to_ptr.hbm [resolvable:$true] %s533
      %536 = dma.vmem_to_hbm [thread:$0]  %s532, 16, %s534, [#allocation5]
    $region37: #{tpu_custom_call.1} parent=1 // pred_fallthru
      _
    // Predicated region
    $region38: #{tpu_custom_call.1} parent=1 // pred_check
      _
    $region39: #{tpu_custom_call.1} parent=1 // pred_check_branch
      %538 = sbr.rel (0) target = $region41
    $region40: #{tpu_custom_call.1} parent=1 // pred_region
      %540 = dma.done [#allocation5], 16
    $region41: #{tpu_custom_call.1} parent=1 // pred_fallthru
      _
    %541 = vsyncpa [#allocation4], 1
    %542 = vsyncpa [#allocation5], 1

</llo_original>
